<compile_context>
chip_gen: v6e
topology: v6e:2x2x1
jax: 0.10.0
libtpu: 0.0.40
codegen_flags: <defaults>
</compile_context>

<pallas_src>
import numpy as np
import jax
import jax.numpy as jnp
from jax.experimental import pallas as pl
from jax.experimental.pallas import tpu as pltpu


def _dma_copy_kernel(x_hbm_ref, o_hbm_ref, sem):
    # Single whole-array HBM -> HBM DMA: no VMEM staging, no grid bookkeeping.
    copy = pltpu.make_async_copy(x_hbm_ref, o_hbm_ref, sem)
    copy.start()
    copy.wait()


def _resolve_new_shape(new_shape, total):
    """Resolve a single -1 entry the same way torch.reshape does."""
    new_shape = list(new_shape)
    if -1 in new_shape:
        neg_idx = new_shape.index(-1)
        known = 1
        for i, s in enumerate(new_shape):
            if i != neg_idx:
                known *= s
        assert known != 0 and total % known == 0, \
            "cannot reshape: sizes incompatible"
        new_shape[neg_idx] = total // known
    prod = 1
    for s in new_shape:
        prod *= s
    assert prod == total, "reshape would change number of elements"
    return tuple(new_shape)


def pallas_reshape(x, new_shape):
    """Reshape `x` to `new_shape` (one dim may be -1); copy runs in Pallas."""
    total = int(np.prod(x.shape)) if x.ndim > 0 else 1
    out_shape = _resolve_new_shape(new_shape, total)

    # Metadata-only reshape first, so the Pallas DMA directly produces the
    # final-shaped output buffer (no pad, no slice, no post-kernel reshape).
    x_reshaped = jnp.reshape(x, out_shape)

    if total == 0:
        # Nothing to copy.
        return x_reshaped

    return pl.pallas_call(
        _dma_copy_kernel,
        out_shape=jax.ShapeDtypeStruct(out_shape, x.dtype),
        in_specs=[pl.BlockSpec(memory_space=pl.ANY)],
        out_specs=pl.BlockSpec(memory_space=pl.ANY),
        scratch_shapes=[pltpu.SemaphoreType.DMA],
    )(x_reshaped)


class Reshape:
    """JAX/Pallas port of neuralnet_pytorch Reshape (no learnable params)."""

    def __init__(self, shape, input_shape=None):
        self.new_shape = tuple(shape)
        self.input_shape = input_shape

    def __call__(self, x):
        return pallas_reshape(x, self.new_shape)


if __name__ == "__main__":
    key = jax.random.PRNGKey(0)
    # Small NCHW-style input consistent with typical module usage.
    x = jax.random.normal(key, (2, 4, 16, 16), dtype=jnp.float32)

    # Case 1: flatten spatial dims, letting -1 infer the batch dimension.
    module = Reshape((-1, 4 * 16 * 16), input_shape=(None, 4, 16, 16))
    out = jax.block_until_ready(module(x))
    ref = jnp.reshape(x, (-1, 4 * 16 * 16))
    assert out.shape == (2, 1024), out.shape
    assert out.dtype == x.dtype
    assert bool(jnp.array_equal(out, ref))

    # Case 2: reshape to a different rank.
    module2 = Reshape((2, 16, -1))
    out2 = jax.block_until_ready(module2(x))
    assert out2.shape == (2, 16, 64)
    assert bool(jnp.array_equal(out2, jnp.reshape(x, (2, 16, 64))))

    # Case 3: narrow dtype (bf16) to check dtype-agnostic DMA path.
    x_bf16 = x.astype(jnp.bfloat16)
    module3 = Reshape((8, -1))
    out3 = jax.block_until_ready(module3(x_bf16))
    assert out3.shape == (8, 256)
    assert out3.dtype == jnp.bfloat16
    assert bool(jnp.array_equal(out3, jnp.reshape(x_bf16, (8, 256))))

    print("KERNEL_OK")
</pallas_src>

<mosaic_0001>
module attributes {stable_mosaic.version = 11 : i64} {
  func.func @_dma_copy_kernel(%arg0: memref<2x1024xf32, #tpu.memory_space<any>>, %arg1: memref<2x1024xf32, #tpu.memory_space<any>>, %arg2: memref<!tpu.dma_semaphore, #tpu.memory_space<semaphore_mem>>) attributes {dimension_semantics = [], scalar_prefetch = 0 : i64, scratch_operands = 1 : i64, tpu.core_type = #tpu.core_type<tc>} {
    tpu.enqueue_dma source(%arg0 : memref<2x1024xf32, #tpu.memory_space<any>>) target(%arg1 : memref<2x1024xf32, #tpu.memory_space<any>>) target_semaphore(%arg2 : memref<!tpu.dma_semaphore, #tpu.memory_space<semaphore_mem>>)
    tpu.wait_dma2 semaphore(%arg2 : memref<!tpu.dma_semaphore, #tpu.memory_space<semaphore_mem>>) src(%arg0 : memref<2x1024xf32, #tpu.memory_space<any>>) dst(%arg1 : memref<2x1024xf32, #tpu.memory_space<any>>)
    return
  }
}

</mosaic_0001>

<llo_original>
// kernel: tpu_custom_call.1
$region0: #{tpu_custom_call.1}
  #allocation0 [shape = 'u32[]', space=smem, size = 0x4, offset = 0x4, fixed_abs, tag = 'smem constant byte address 0x4 - core index']
  #allocation1 [shape = 'u32[144,128]{1,0:T(1,128)}', space=vmem, size = 0x12000, scoped, tag = 'internal scratch']
  #allocation2 [shape = 's32[1]{0}', space=sflag, size = 0x4, scoped, tag = 'scratch operand']
  #allocation3 [shape = 's32[]', space=sflag, size = 0x4, offset = 0, fixed_abs, tag = 'sflag constant byte address 0x0 - dummy sync flag']
  #allocation4 [shape = 'u32[0]{0}', space=smem, size = 0, offset = 0, fixed_abs, tag = 'smem constant byte address 0x0 - null']
  %s0 = inlined_call_operand.hbm [shape: f32[2,1024], index: 0, kind: input, shape index: {}]
  %s1 = inlined_call_operand.hbm [shape: f32[2,1024], index: 1, kind: output, shape index: {}]
  %s2 = sld [smem:[#allocation0]]
  $region2: #{tpu_custom_call.1} parent=0
    _
  %s4 = ssub.s32 1, %s2
  %s5 = scalar_select 0, %s4, %s2
  %s7 = sshll.u32 1, 14
  %s8 = sxor.u32 4294967295, %s7
  %12 = dma.general %s0, 256, %s1, [#allocation2], 131072, [#allocation4], 0, 0
  %s13 = smul.u32 2, 1
  %s14 = smul.u32 %s13, 8
  %s15 = sshll.u32 %s14, 4
  %16 = dma.done [#allocation2], %s15
  %17 = vsyncmov [#allocation2]
  %s18 = vpop.sfrf %17
  %p19 = scmp.eq.s32.totalorder %s18, 0
  %p20 = pneg %p19
  %22 = shalt.err (%p20)

</llo_original>
